<compile_context>
chip_gen: v6e
topology: v6e:2x2x1
jax: 0.10.0
libtpu: 0.0.40
codegen_flags: <defaults>
</compile_context>

<pallas_src>
import jax
import jax.numpy as jnp
from jax.experimental import pallas as pl
from jax.experimental.pallas import tpu as pltpu

# GeM pooling defaults (p=3, eps=1e-6) as used with this few-shot model.
GEM_P = 3.0
GEM_EPS = 1e-6


def _round_up(x, m):
    return ((x + m - 1) // m) * m


def _vmem_capacity_bytes():
    try:
        return int(pltpu.get_tpu_info().vmem_capacity_bytes)
    except Exception:
        return 64 << 20  # conservative fallback (v7x-sized)


def fewshot_kernel(s_ref, feat_ref, emb_w_ref, emb_b_ref, cls_wt_ref,
                   out_ref, acc_ref):
    k = pl.program_id(1)

    @pl.when(k == 0)
    def _init():
        acc_ref[...] = jnp.zeros_like(acc_ref)

    # --- GeM pooling for this channel tile ---------------------------------
    # feat_ref: (TB, TK, HW) with HW on lanes -> reduce the lane axis (XLU).
    f = feat_ref[...].astype(jnp.float32)
    f = jnp.maximum(f, GEM_EPS)
    f_p = f * f * f                                     # p = 3
    mean_p = jnp.mean(f_p, axis=-1)                     # (TB, TK), strictly > 0
    pooled = jnp.exp(jnp.log(mean_p) * (1.0 / GEM_P))   # cube root via EUP exp/log

    # --- partial Embedding matmul: accumulate pooled @ W_tile ---------------
    acc_ref[...] += jnp.dot(pooled.astype(emb_w_ref.dtype), emb_w_ref[...],
                            preferred_element_type=jnp.float32)

    # --- finalize on the last channel tile -----------------------------------
    @pl.when(k == pl.num_programs(1) - 1)
    def _finalize():
        x = acc_ref[...] + emb_b_ref[...]               # (TB, E)
        # F.normalize(x, dim=1) with torch eps=1e-12, then scale by s.
        nrm = jnp.sqrt(jnp.sum(x * x, axis=1, keepdims=True))
        x = x * (s_ref[0] / jnp.maximum(nrm, 1e-12))
        # Classifier: weight rows already L2-normalized in the wrapper.
        out_ref[...] = jnp.dot(x, cls_wt_ref[...],
                               preferred_element_type=jnp.float32
                               ).astype(out_ref.dtype)


def fewshot_forward(feat_nchw, emb_w, emb_b, cls_w, s,
                    *, tk=None, storage_dtype=jnp.float32):
    """GeM pool + embedding + normalize + scale + classifier in one Pallas kernel.

    feat_nchw: (B, C, H, W)  backbone feature map (PyTorch NCHW layout)
    emb_w:     (n_features, n_embedding)   (torch Linear weight, transposed)
    emb_b:     (n_embedding,)
    cls_w:     (num_classes, n_embedding)  (torch Linear weight layout)
    s:         scalar (learnable scale)
    returns:   (B, num_classes) float32 logits
    """
    B, C, H, W = feat_nchw.shape
    E = emb_w.shape[1]
    NC = cls_w.shape[0]
    HW = H * W

    # --- choose channel tile size per chip VMEM -----------------------------
    vmem = _vmem_capacity_bytes()
    tk_max = 1024 if vmem >= (100 << 20) else 512       # v5e/v6e vs v7x
    if tk is not None:
        tk_max = tk
    TK = min(tk_max, _round_up(C, 8))
    assert TK % 8 == 0
    C_pad = _round_up(C, TK)

    # --- batch tiling: give v7x megacore two independent halves -------------
    if B >= 16 and B % 16 == 0:
        TB = B // 2
    else:
        TB = B

    NC_pad = _round_up(NC, 128)                         # lane-dense output

    # --- wrapper-side data prep (cheap / layout only) ------------------------
    feat = feat_nchw.reshape(B, C, HW)                  # pure reshape, no transpose
    if C_pad != C:
        feat = jnp.pad(feat, ((0, 0), (0, C_pad - C), (0, 0)))
        emb_w_p = jnp.pad(emb_w, ((0, C_pad - C), (0, 0)))  # zero rows: no effect
    else:
        emb_w_p = emb_w
    feat = feat.astype(storage_dtype)
    emb_w_p = emb_w_p.astype(storage_dtype)

    # Classifier row-normalization hoisted out of the kernel (weight preproc).
    wnrm = jnp.sqrt(jnp.sum(cls_w.astype(jnp.float32) ** 2, axis=1, keepdims=True))
    cls_wt = (cls_w / jnp.maximum(wnrm, 1e-12)).T       # (E, NC)
    if NC_pad != NC:
        cls_wt = jnp.pad(cls_wt, ((0, 0), (0, NC_pad - NC)))
    cls_wt = cls_wt.astype(jnp.float32)

    emb_b2 = emb_b.reshape(1, E).astype(jnp.float32)
    s1 = jnp.asarray(s, jnp.float32).reshape(1,)

    grid = (B // TB, C_pad // TK)

    out = pl.pallas_call(
        fewshot_kernel,
        out_shape=jax.ShapeDtypeStruct((B, NC_pad), jnp.float32),
        grid=grid,
        in_specs=[
            pl.BlockSpec(memory_space=pltpu.MemorySpace.SMEM),          # s (scalar)
            pl.BlockSpec((TB, TK, HW), lambda b, k: (b, k, 0)),         # feature map
            pl.BlockSpec((TK, E), lambda b, k: (k, 0)),                 # embedding W^T tile
            pl.BlockSpec((1, E), lambda b, k: (0, 0)),                  # embedding bias
            pl.BlockSpec((E, NC_pad), lambda b, k: (0, 0)),             # normalized cls W^T
        ],
        out_specs=pl.BlockSpec((TB, NC_pad), lambda b, k: (b, 0)),
        scratch_shapes=[pltpu.VMEM((TB, E), jnp.float32)],              # accumulator
        compiler_params=pltpu.CompilerParams(
            dimension_semantics=("parallel", "arbitrary"),
            vmem_limit_bytes=(64 << 20) if tk_max >= 1024 else None,
        ),
    )(s1, feat, emb_w_p, emb_b2, cls_wt)

    return out[:, :NC]


def fewshot_reference(feat_nchw, emb_w, emb_b, cls_w, s):
    """Plain-JAX reference mirroring the PyTorch forward."""
    f = jnp.maximum(feat_nchw.astype(jnp.float32), GEM_EPS)
    pooled = jnp.mean(f ** GEM_P, axis=(2, 3)) ** (1.0 / GEM_P)       # (B, C)
    x = pooled @ emb_w + emb_b                                        # Embedding
    x = x / jnp.maximum(jnp.linalg.norm(x, axis=1, keepdims=True), 1e-12)
    x = s * x
    w = cls_w / jnp.maximum(jnp.linalg.norm(cls_w, axis=1, keepdims=True), 1e-12)
    return x @ w.T


if __name__ == "__main__":
    # Small, deterministic synthetic setup (scaled-down from
    # n_features=2048, n_embedding=2048, num_classes=100).
    B, C, H, W = 2, 32, 4, 4        # backbone feature map
    n_embedding = 32
    num_classes = 16

    key = jax.random.PRNGKey(0)
    k_feat, k_ew, k_eb, k_cw = jax.random.split(key, 4)

    feat = jax.random.normal(k_feat, (B, C, H, W), dtype=jnp.float32)

    # Embedding Linear(C, n_embedding): deterministic uniform init (PyTorch-style bound).
    bound_e = 1.0 / jnp.sqrt(C)
    emb_w = jax.random.uniform(k_ew, (C, n_embedding), jnp.float32, -bound_e, bound_e)
    emb_b = jax.random.uniform(k_eb, (n_embedding,), jnp.float32, -bound_e, bound_e)

    # Classifier Linear(n_embedding, num_classes, bias=None): xavier-uniform-style init.
    bound_c = jnp.sqrt(6.0 / (n_embedding + num_classes))
    cls_w = jax.random.uniform(k_cw, (num_classes, n_embedding), jnp.float32,
                               -bound_c, bound_c)

    s = jnp.float32(10.0)           # nn.Parameter([10.])

    ref = fewshot_reference(feat, emb_w, emb_b, cls_w, s)

    # 1) default tiling (single K step at these small shapes)
    out = jax.block_until_ready(fewshot_forward(feat, emb_w, emb_b, cls_w, s))
    assert out.shape == (B, num_classes)
    assert jnp.allclose(out, ref, atol=1e-4, rtol=1e-4), (
        f"max abs err {jnp.max(jnp.abs(out - ref))}")

    # 2) forced small channel tile to exercise the multi-step accumulation path
    out_tiled = jax.block_until_ready(
        fewshot_forward(feat, emb_w, emb_b, cls_w, s, tk=16))
    assert out_tiled.shape == (B, num_classes)
    assert jnp.allclose(out_tiled, ref, atol=1e-4, rtol=1e-4), (
        f"max abs err {jnp.max(jnp.abs(out_tiled - ref))}")

    print("KERNEL_OK")
</pallas_src>

<mosaic_0001>
module attributes {stable_mosaic.version = 11 : i64} {
  func.func @fewshot_kernel(%arg0: i32, %arg1: i32, %arg2: memref<1xf32, #tpu.memory_space<smem>>, %arg3: memref<2x32x16xf32, #tpu.memory_space<vmem>>, %arg4: memref<32x32xf32, #tpu.memory_space<vmem>>, %arg5: memref<1x32xf32, #tpu.memory_space<vmem>>, %arg6: memref<32x128xf32, #tpu.memory_space<vmem>>, %arg7: memref<2x128xf32, #tpu.memory_space<vmem>>, %arg8: memref<2x32xf32, #tpu.memory_space<vmem>>) attributes {dimension_semantics = [#tpu.dimension_semantics<parallel>, #tpu.dimension_semantics<arbitrary>], iteration_bounds = array<i64: 1, 1>, scalar_prefetch = 0 : i64, scratch_operands = 1 : i64, tpu.core_type = #tpu.core_type<tc>, window_params = [{transform_indices = @transform_0, window_bounds = array<i64: 1>}, {transform_indices = @transform_1, window_bounds = array<i64: 2, 32, 16>}, {transform_indices = @transform_2, window_bounds = array<i64: 32, 32>}, {pipeline_mode = #tpu.pipeline_mode<synchronous>, transform_indices = @transform_3, window_bounds = array<i64: 1, 32>}, {pipeline_mode = #tpu.pipeline_mode<synchronous>, transform_indices = @transform_4, window_bounds = array<i64: 32, 128>}, {transform_indices = @transform_5, window_bounds = array<i64: 2, 128>}]} {
    %c0_i32 = arith.constant 0 : i32
    %0 = arith.cmpi eq, %arg1, %c0_i32 : i32
    %1 = arith.extui %0 : i1 to i32
    %c0_i32_0 = arith.constant 0 : i32
    %2 = arith.cmpi ne, %1, %c0_i32_0 : i32
    scf.if %2 {
      %cst_15 = arith.constant 0.000000e+00 : f32
      %23 = vector.broadcast %cst_15 : f32 to vector<2x32xf32>
      %c0_16 = arith.constant 0 : index
      %c0_17 = arith.constant 0 : index
      %24 = vector.load %arg8[%c0_16, %c0_17] : memref<2x32xf32, #tpu.memory_space<vmem>>, vector<2x32xf32>
      tpu.vector_store %arg8[%c0_16, %c0_17], %23 {strides = array<i32>} : memref<2x32xf32, #tpu.memory_space<vmem>>, vector<2x32xf32>,
    } else {
    }
    %c0 = arith.constant 0 : index
    %c0_1 = arith.constant 0 : index
    %c0_2 = arith.constant 0 : index
    %3 = vector.load %arg3[%c0, %c0_1, %c0_2] : memref<2x32x16xf32, #tpu.memory_space<vmem>>, vector<2x32x16xf32>
    %cst = arith.constant 9.99999997E-7 : f32
    %4 = vector.broadcast %cst : f32 to vector<2x32x16xf32>
    %5 = arith.maximumf %3, %4 : vector<2x32x16xf32>
    %6 = arith.mulf %5, %5 : vector<2x32x16xf32>
    %7 = arith.mulf %6, %5 : vector<2x32x16xf32>
    %cst_3 = arith.constant dense<0.000000e+00> : vector<2x32xf32>
    %8 = vector.multi_reduction <add>, %7, %cst_3 [2] : vector<2x32x16xf32> to vector<2x32xf32>
    %cst_4 = arith.constant 1.600000e+01 : f32
    %9 = vector.broadcast %cst_4 : f32 to vector<2x32xf32>
    %10 = arith.divf %8, %9 : vector<2x32xf32>
    %11 = math.log %10 : vector<2x32xf32>
    %cst_5 = arith.constant 0.333333343 : f32
    %12 = vector.broadcast %cst_5 : f32 to vector<2x32xf32>
    %13 = arith.mulf %11, %12 : vector<2x32xf32>
    %14 = math.exp %13 : vector<2x32xf32>
    %c0_6 = arith.constant 0 : index
    %c0_7 = arith.constant 0 : index
    %15 = vector.load %arg8[%c0_6, %c0_7] : memref<2x32xf32, #tpu.memory_space<vmem>>, vector<2x32xf32>
    %c0_8 = arith.constant 0 : index
    %c0_9 = arith.constant 0 : index
    %16 = vector.load %arg4[%c0_8, %c0_9] : memref<32x32xf32, #tpu.memory_space<vmem>>, vector<32x32xf32>
    %cst_10 = arith.constant dense<0.000000e+00> : vector<2x32xf32>
    %17 = tpu.matmul %14, %16, %cst_10 {dimension_numbers = #tpu.dot_dimension_numbers<[1], [0], [0], [1], [0, 0, 1, 1], [], []>} : vector<2x32xf32>, vector<32x32xf32>, vector<2x32xf32> -> vector<2x32xf32>
    %18 = arith.addf %15, %17 : vector<2x32xf32>
    %c0_11 = arith.constant 0 : index
    %c0_12 = arith.constant 0 : index
    %19 = vector.load %arg8[%c0_11, %c0_12] : memref<2x32xf32, #tpu.memory_space<vmem>>, vector<2x32xf32>
    tpu.vector_store %arg8[%c0_11, %c0_12], %18 {strides = array<i32>} : memref<2x32xf32, #tpu.memory_space<vmem>>, vector<2x32xf32>,
    %c0_i32_13 = arith.constant 0 : i32
    %20 = arith.cmpi eq, %arg1, %c0_i32_13 : i32
    %21 = arith.extui %20 : i1 to i32
    %c0_i32_14 = arith.constant 0 : i32
    %22 = arith.cmpi ne, %21, %c0_i32_14 : i32
    scf.if %22 {
      %c0_15 = arith.constant 0 : index
      %c0_16 = arith.constant 0 : index
      %23 = vector.load %arg8[%c0_15, %c0_16] : memref<2x32xf32, #tpu.memory_space<vmem>>, vector<2x32xf32>
      %c0_17 = arith.constant 0 : index
      %c0_18 = arith.constant 0 : index
      %24 = vector.load %arg5[%c0_17, %c0_18] : memref<1x32xf32, #tpu.memory_space<vmem>>, vector<1x32xf32>
      %25 = vector.broadcast %24 : vector<1x32xf32> to vector<2x32xf32>
      %26 = arith.addf %23, %25 : vector<2x32xf32>
      %27 = arith.mulf %26, %26 : vector<2x32xf32>
      %cst_19 = arith.constant dense<0.000000e+00> : vector<2xf32>
      %28 = vector.multi_reduction <add>, %27, %cst_19 [1] : vector<2x32xf32> to vector<2xf32>
      %29 = vector.shape_cast %28 : vector<2xf32> to vector<2x1xf32>
      %30 = math.sqrt %29 : vector<2x1xf32>
      %c0_20 = arith.constant 0 : index
      %31 = memref.load %arg2[%c0_20] : memref<1xf32, #tpu.memory_space<smem>>
      %cst_21 = arith.constant 9.99999996E-13 : f32
      %32 = vector.broadcast %cst_21 : f32 to vector<2x1xf32>
      %33 = arith.maximumf %30, %32 : vector<2x1xf32>
      %34 = vector.broadcast %31 : f32 to vector<2x1xf32>
      %35 = arith.divf %34, %33 : vector<2x1xf32>
      %36 = vector.broadcast %35 : vector<2x1xf32> to vector<2x32xf32>
      %37 = arith.mulf %26, %36 : vector<2x32xf32>
      %c0_22 = arith.constant 0 : index
      %c0_23 = arith.constant 0 : index
      %38 = vector.load %arg6[%c0_22, %c0_23] : memref<32x128xf32, #tpu.memory_space<vmem>>, vector<32x128xf32>
      %cst_24 = arith.constant dense<0.000000e+00> : vector<2x128xf32>
      %39 = tpu.matmul %37, %38, %cst_24 {dimension_numbers = #tpu.dot_dimension_numbers<[1], [0], [0], [1], [0, 0, 1, 1], [], []>} : vector<2x32xf32>, vector<32x128xf32>, vector<2x128xf32> -> vector<2x128xf32>
      %c0_25 = arith.constant 0 : index
      %c0_26 = arith.constant 0 : index
      %40 = vector.load %arg7[%c0_25, %c0_26] : memref<2x128xf32, #tpu.memory_space<vmem>>, vector<2x128xf32>
      tpu.vector_store %arg7[%c0_25, %c0_26], %39 {strides = array<i32>} : memref<2x128xf32, #tpu.memory_space<vmem>>, vector<2x128xf32>,
    } else {
    }
    return
  }
  func.func @transform_0(%arg0: i32, %arg1: i32) -> i32 {
    %c0_i32 = arith.constant 0 : i32
    %c0_i32_0 = arith.constant 0 : i32
    return %c0_i32 : i32
  }
  func.func @transform_1(%arg0: i32, %arg1: i32) -> (i32, i32, i32) {
    %c0_i32 = arith.constant 0 : i32
    %c0_i32_0 = arith.constant 0 : i32
    return %arg0, %arg1, %c0_i32 : i32, i32, i32
  }
  func.func @transform_2(%arg0: i32, %arg1: i32) -> (i32, i32) {
    %c0_i32 = arith.constant 0 : i32
    %c0_i32_0 = arith.constant 0 : i32
    return %arg1, %c0_i32 : i32, i32
  }
  func.func @transform_3(%arg0: i32, %arg1: i32) -> (i32, i32) {
    %c0_i32 = arith.constant 0 : i32
    %c0_i32_0 = arith.constant 0 : i32
    %c0_i32_1 = arith.constant 0 : i32
    return %c0_i32, %c0_i32_0 : i32, i32
  }
  func.func @transform_4(%arg0: i32, %arg1: i32) -> (i32, i32) {
    %c0_i32 = arith.constant 0 : i32
    %c0_i32_0 = arith.constant 0 : i32
    %c0_i32_1 = arith.constant 0 : i32
    return %c0_i32, %c0_i32_0 : i32, i32
  }
  func.func @transform_5(%arg0: i32, %arg1: i32) -> (i32, i32) {
    %c0_i32 = arith.constant 0 : i32
    %c0_i32_0 = arith.constant 0 : i32
    return %arg0, %c0_i32 : i32, i32
  }
}

</mosaic_0001>

<llo_original>
// kernel: tpu_custom_call.1
$region0: #{tpu_custom_call.1}
  #allocation0 [shape = 'u32[]', space=smem, size = 0x4, offset = 0x4, fixed_abs, tag = 'smem constant byte address 0x4 - core index']
  #allocation1 [shape = 'u32[144,128]{1,0:T(1,128)}', space=vmem, size = 0x12000, scoped, tag = 'internal scratch']
  #allocation2 [shape = 'f32[2,32]{1,0:T(2,128)}', space=vmem, size = 0x400, scoped, tag = 'scratch operand']
  #allocation3 [shape = 'f32[1]{0:T(128)S(6)}', space=smem, size = 0x200, scoped, tag = 'scoped memory for tpu_custom_call.1']
  %s0 = inlined_call_operand.<no memory space> [shape: f32[1], index: 0, kind: input, shape index: {}]
  %s1 = inlined_call_operand.vmem [shape: f32[2,32,16], index: 1, kind: input, shape index: {}]
  %s2 = inlined_call_operand.vmem [shape: f32[32,32], index: 2, kind: input, shape index: {}]
  %s3 = inlined_call_operand.vmem [shape: f32[1,32], index: 3, kind: input, shape index: {}]
  %s4 = inlined_call_operand.vmem [shape: f32[32,128], index: 4, kind: input, shape index: {}]
  %s5 = inlined_call_operand.hbm [shape: f32[2,128], index: 5, kind: output, shape index: {}]
  %s6 = sld [smem:[#allocation0]]
  $region38: #{tpu_custom_call.1} parent=0
    _
  %s8 = ssub.s32 1, %s6
  %s9 = scalar_select 0, %s8, %s6
  %10 = sst [smem:[#allocation3]] %s0
  $region1: #{tpu_custom_call.1} parent=0
    #allocation4 [shape = 'u8[1024]{0}', space=vmem, size = 0x400, scoped, tag = 'output window, operand 0, single buffered']
    #allocation5 [shape = 's32[1]{0}', space=sflag, size = 0x4, scoped, tag = 'scoped memory for tpu_custom_call.1']
    %11 = vsyncpa [#allocation5], 0
    // Predicated region
    $region2: #{tpu_custom_call.1} parent=1 // pred_check
      _
    $region3: #{tpu_custom_call.1} parent=1 // pred_check_branch
      %13 = sbr.rel (0) target = $region5
    $region4: #{tpu_custom_call.1} parent=1 // pred_region
      _
    $region5: #{tpu_custom_call.1} parent=1 // pred_fallthru
      _
    // Predicated region
    $region6: #{tpu_custom_call.1} parent=1 // pred_check
      _
    $region7: #{tpu_custom_call.1} parent=1 // pred_check_branch
      %15 = sbr.rel (0) target = $region9
    $region8: #{tpu_custom_call.1} parent=1 // pred_region
      _
    $region9: #{tpu_custom_call.1} parent=1 // pred_fallthru
      _
    // Predicated region
    $region10: #{tpu_custom_call.1} parent=1 // pred_check
      _
    $region11: #{tpu_custom_call.1} parent=1 // pred_check_branch
      %17 = sbr.rel (0) target = $region13
    $region12: #{tpu_custom_call.1} parent=1 // pred_region
      _
    $region13: #{tpu_custom_call.1} parent=1 // pred_fallthru
      _
    // Predicated region
    $region14: #{tpu_custom_call.1} parent=1 // pred_check
      _
    $region15: #{tpu_custom_call.1} parent=1 // pred_check_branch
      %19 = sbr.rel (0) target = $region17
    $region16: #{tpu_custom_call.1} parent=1 // pred_region
      _
    $region17: #{tpu_custom_call.1} parent=1 // pred_fallthru
      _
    // Predicated region
    $region18: #{tpu_custom_call.1} parent=1 // pred_check
      _
    $region19: #{tpu_custom_call.1} parent=1 // pred_check_branch
      %21 = sbr.rel (0) target = $region21
    $region20: #{tpu_custom_call.1} parent=1 // pred_region
      _
    $region21: #{tpu_custom_call.1} parent=1 // pred_fallthru
      _
    %p22 = scmp.eq.s32.totalorder 0, 0
    // Predicated region
    $region22: #{tpu_custom_call.1} parent=1 // pred_check
      %p23 = pneg %p22
    $region23: #{tpu_custom_call.1} parent=1 // pred_check_branch
      %25 = sbr.rel (%p23) target = $region25
    $region24: #{tpu_custom_call.1} parent=1 // pred_region
      %vm26 = vcmask 254976
      %27 = vst.msk [vmem:[#allocation2] sm:$0x3] %vm26, 0.0
    $region25: #{tpu_custom_call.1} parent=1 // pred_fallthru
      _
    %v28 = vld [vmem:[%s1] sm:$0xff]
    %v29 = vld [vmem:[%s1 + $0x8] sm:$0xff]
    %v30 = vld [vmem:[%s1 + $0x10] sm:$0xff]
    %v31 = vld [vmem:[%s1 + $0x18] sm:$0xff]
    %v32 = vld [vmem:[%s1 + $0x20] sm:$0xff]
    %v33 = vld [vmem:[%s1 + $0x28] sm:$0xff]
    %v34 = vld [vmem:[%s1 + $0x30] sm:$0xff]
    %v35 = vld [vmem:[%s1 + $0x38] sm:$0xff]
    %v36 = vmax.f32 %v28, 1e-06
    %v37 = vmax.f32 %v29, 1e-06
    %v38 = vmax.f32 %v30, 1e-06
    %v39 = vmax.f32 %v31, 1e-06
    %v40 = vmax.f32 %v32, 1e-06
    %v41 = vmax.f32 %v33, 1e-06
    %v42 = vmax.f32 %v34, 1e-06
    %v43 = vmax.f32 %v35, 1e-06
    %v44 = vmul.f32 %v36, %v36
    %v45 = vmul.f32 %v37, %v37
    %v46 = vmul.f32 %v38, %v38
    %v47 = vmul.f32 %v39, %v39
    %v48 = vmul.f32 %v40, %v40
    %v49 = vmul.f32 %v41, %v41
    %v50 = vmul.f32 %v42, %v42
    %v51 = vmul.f32 %v43, %v43
    %v52 = vmul.f32 %v44, %v36
    %v53 = vmul.f32 %v45, %v37
    %v54 = vmul.f32 %v46, %v38
    %v55 = vmul.f32 %v47, %v39
    %v56 = vmul.f32 %v48, %v40
    %v57 = vmul.f32 %v49, %v41
    %v58 = vmul.f32 %v50, %v42
    %v59 = vmul.f32 %v51, %v43
    %vm60 = vcmask 130048
    %v61 = vsel %vm60, %v52, 0.0
    %62 = vadd.xlane.f32.xlu0 %v61
    %v63 = vpop.xlane.xlu0 %62
    %v64 = vsel %vm60, %v53, 0.0
    %65 = vadd.xlane.f32.xlu0 %v64
    %v66 = vpop.xlane.xlu0 %65
    %v67 = vsel %vm60, %v54, 0.0
    %68 = vadd.xlane.f32.xlu0 %v67
    %v69 = vpop.xlane.xlu0 %68
    %v70 = vsel %vm60, %v55, 0.0
    %71 = vadd.xlane.f32.xlu0 %v70
    %v72 = vpop.xlane.xlu0 %71
    %v73 = vsel %vm60, %v56, 0.0
    %74 = vadd.xlane.f32.xlu0 %v73
    %v75 = vpop.xlane.xlu0 %74
    %v76 = vsel %vm60, %v57, 0.0
    %77 = vadd.xlane.f32.xlu0 %v76
    %v78 = vpop.xlane.xlu0 %77
    %v79 = vsel %vm60, %v58, 0.0
    %80 = vadd.xlane.f32.xlu0 %v79
    %v81 = vpop.xlane.xlu0 %80
    %v82 = vsel %vm60, %v59, 0.0
    %83 = vadd.xlane.f32.xlu0 %v82
    %v84 = vpop.xlane.xlu0 %83
    %v85 = vrcp.pop 16.0
    %v86 = vmul.f32 %v63, %v85
    %v87 = vmul.f32 %v66, %v85
    %v88 = vmul.f32 %v69, %v85
    %v89 = vmul.f32 %v72, %v85
    %v90 = vmul.f32 %v75, %v85
    %v91 = vmul.f32 %v78, %v85
    %v92 = vmul.f32 %v81, %v85
    %v93 = vmul.f32 %v84, %v85
    %v94 = vlog2.pop %v86
    %v95 = vmul.f32 %v94, 0.6931472
    %v96 = vlog2.pop %v87
    %v97 = vmul.f32 %v96, 0.6931472
    %v98 = vlog2.pop %v88
    %v99 = vmul.f32 %v98, 0.6931472
    %v100 = vlog2.pop %v89
    %v101 = vmul.f32 %v100, 0.6931472
    %v102 = vlog2.pop %v90
    %v103 = vmul.f32 %v102, 0.6931472
    %v104 = vlog2.pop %v91
    %v105 = vmul.f32 %v104, 0.6931472
    %v106 = vlog2.pop %v92
    %v107 = vmul.f32 %v106, 0.6931472
    %v108 = vlog2.pop %v93
    %v109 = vmul.f32 %v108, 0.6931472
    %v110 = vmul.f32 %v95, 0.33333334
    %v111 = vmul.f32 %v97, 0.33333334
    %v112 = vmul.f32 %v99, 0.33333334
    %v113 = vmul.f32 %v101, 0.33333334
    %v114 = vmul.f32 %v103, 0.33333334
    %v115 = vmul.f32 %v105, 0.33333334
    %v116 = vmul.f32 %v107, 0.33333334
    %v117 = vmul.f32 %v109, 0.33333334
    %v118 = vmul.f32 %v110, 1.442695
    %v119 = vpow.pop %v118
    %v120 = vmul.f32 %v111, 1.442695
    %v121 = vpow.pop %v120
    %v122 = vmul.f32 %v112, 1.442695
    %v123 = vpow.pop %v122
    %v124 = vmul.f32 %v113, 1.442695
    %v125 = vpow.pop %v124
    %v126 = vmul.f32 %v114, 1.442695
    %v127 = vpow.pop %v126
    %v128 = vmul.f32 %v115, 1.442695
    %v129 = vpow.pop %v128
    %v130 = vmul.f32 %v116, 1.442695
    %v131 = vpow.pop %v130
    %v132 = vmul.f32 %v117, 1.442695
    %v133 = vpow.pop %v132
    %v134 = vld [vmem:[#allocation2] sm:$0x3]
    %v135 = vld [vmem:[%s2] sm:$0xff]
    %v136 = vld [vmem:[%s2 + $0x8] sm:$0xff]
    %v137 = vld [vmem:[%s2 + $0x10] sm:$0xff]
    %v138 = vld [vmem:[%s2 + $0x18] sm:$0xff]
    %v147 = vlaneseq
    %v148 = vand.u32 %v147, 127
    %v149 = vlaneseq
    %v150 = vshrl.u32 %v149, 7
    %v151 = vsub.s32 %v148, %v150
    %v152 = vrot.slane %v119, %v151
    %v153 = vadd.s32 %v148, 4294967288
    %v154 = vlaneseq
    %v155 = vshrl.u32 %v154, 7
    %v156 = vsub.s32 %v153, %v155
    %v157 = vrot.slane %v121, %v156
    %vm158 = vcmask 130112
    %v159 = vsel %vm158, %v157, %v152
    %v160 = vadd.s32 %v148, 4294967280
    %v161 = vlaneseq
    %v162 = vshrl.u32 %v161, 7
    %v163 = vsub.s32 %v160, %v162
    %v164 = vrot.slane %v123, %v163
    %vm165 = vcmask 195712
    %v166 = vsel %vm165, %v164, %v159
    %v167 = vadd.s32 %v148, 4294967272
    %v168 = vlaneseq
    %v169 = vshrl.u32 %v168, 7
    %v170 = vsub.s32 %v167, %v169
    %v171 = vrot.slane %v125, %v170
    %vm172 = vcmask 261312
    %v173 = vsel %vm172, %v171, %v166
    %v174 = vlaneseq
    %v175 = vshrl.u32 %v174, 7
    %v176 = vsub.s32 %v148, %v175
    %v177 = vrot.slane %v127, %v176
    %v178 = vlaneseq
    %v179 = vshrl.u32 %v178, 7
    %v180 = vsub.s32 %v153, %v179
    %v181 = vrot.slane %v129, %v180
    %v182 = vsel %vm158, %v181, %v177
    %v183 = vlaneseq
    %v184 = vshrl.u32 %v183, 7
    %v185 = vsub.s32 %v160, %v184
    %v186 = vrot.slane %v131, %v185
    %v187 = vsel %vm165, %v186, %v182
    %v188 = vlaneseq
    %v189 = vshrl.u32 %v188, 7
    %v190 = vsub.s32 %v167, %v189
    %v191 = vrot.slane %v133, %v190
    %v192 = vsel %vm172, %v191, %v187
    %vm193 = vcmask 1041409
    %v194 = vsel %vm193, %v192, %v173
    %vm195 = vcmask 261120
    %v196 = vsel %vm195, %v194, 0
    %198 = vmatprep.subr.mxu0 0.0
    %199 = vmatpush1.msra.mxu0 0.0
    %200 = vmatprep.subr.mxu0 0.0
    %201 = vmatpush1.msra.mxu0 0.0
    %202 = vmatprep.subr.mxu0 0.0
    %203 = vmatpush1.msra.mxu0 0.0
    %204 = vmatprep.subr.mxu0 0.0
    %205 = vmatpush1.msra.mxu0 0.0
    %206 = vmatprep.subr.mxu0 0.0
    %207 = vmatpush1.msra.mxu0 0.0
    %208 = vmatprep.subr.mxu0 0.0
    %209 = vmatpush1.msra.mxu0 0.0
    %210 = vmatprep.subr.mxu0 0.0
    %211 = vmatpush1.msra.mxu0 0.0
    %212 = vmatprep.subr.mxu0 0.0
    %213 = vmatpush1.msra.mxu0 0.0
    %214 = vmatprep.subr.mxu0 0.0
    %215 = vmatpush1.msra.mxu0 0.0
    %216 = vmatprep.subr.mxu0 0.0
    %217 = vmatpush1.msra.mxu0 0.0
    %218 = vmatprep.subr.mxu0 0.0
    %219 = vmatpush1.msra.mxu0 0.0
    %220 = vmatprep.subr.mxu0 0.0
    %221 = vmatpush1.msra.mxu0 0.0
    %222 = vmatprep.subr.mxu0 0.0
    %223 = vmatpush1.msra.mxu0 %v138
    %224 = vmatprep.subr.mxu0 0.0
    %225 = vmatpush1.msra.mxu0 %v137
    %226 = vmatprep.subr.mxu0 0.0
    %227 = vmatpush1.msra.mxu0 %v136
    %228 = vmatprep.subr.mxu0 0.0
    %229 = vmatpush1.msra.mxu0 %v135
    %230 = vmatprep.subr.mxu0 0.0
    %231 = vmatpush2.msra.mxu0 0.0
    %232 = vmatprep.subr.mxu0 0.0
    %233 = vmatpush2.msra.mxu0 0.0
    %234 = vmatprep.subr.mxu0 0.0
    %235 = vmatpush2.msra.mxu0 0.0
    %236 = vmatprep.subr.mxu0 0.0
    %237 = vmatpush2.msra.mxu0 0.0
    %238 = vmatprep.subr.mxu0 0.0
    %239 = vmatpush2.msra.mxu0 0.0
    %240 = vmatprep.subr.mxu0 0.0
    %241 = vmatpush2.msra.mxu0 0.0
    %242 = vmatprep.subr.mxu0 0.0
    %243 = vmatpush2.msra.mxu0 0.0
    %244 = vmatprep.subr.mxu0 0.0
    %245 = vmatpush2.msra.mxu0 0.0
    %246 = vmatprep.subr.mxu0 0.0
    %247 = vmatpush2.msra.mxu0 0.0
    %248 = vmatprep.subr.mxu0 0.0
    %249 = vmatpush2.msra.mxu0 0.0
    %250 = vmatprep.subr.mxu0 0.0
    %251 = vmatpush2.msra.mxu0 0.0
    %252 = vmatprep.subr.mxu0 0.0
    %253 = vmatpush2.msra.mxu0 0.0
    %254 = vmatprep.subr.mxu0 0.0
    %255 = vmatpush2.msra.mxu0 0.0
    %256 = vmatprep.subr.mxu0 0.0
    %257 = vmatpush2.msra.mxu0 0.0
    %258 = vmatprep.subr.mxu0 0.0
    %259 = vmatpush2.msra.mxu0 0.0
    %260 = vmatprep.subr.mxu0 0.0
    %261 = vmatpush2.msra.mxu0 0.0
    %262 = vmatprep.mubr.f32.mxu0 0.0
    %263 = vmatmul.mubr.f32.gmra.mxu0 %v196
    %v264 = vpop.f32.mrf.mxu0
    %v265 = vadd.f32 0.0, %v264
    %v266 = vpop.f32.mrf.mxu0
    %267 = vdwg.mxu0
    %v268 = vadd.f32 %v134, %v265
    %vm269 = vcmask 254976
    %270 = vst.msk [vmem:[#allocation2] sm:$0x3] %vm269, %v268
    // Predicated region
    $region26: #{tpu_custom_call.1} parent=1 // pred_check
      %p271 = pneg %p22
    $region27: #{tpu_custom_call.1} parent=1 // pred_check_branch
      %273 = sbr.rel (%p271) target = $region29
    $region28: #{tpu_custom_call.1} parent=1 // pred_region
      %v274 = vld [vmem:[#allocation2] sm:$0x3]
      %v275 = vld [vmem:[%s3] sm:$0x1]
      %v277 = vlaneseq
      %v278 = vshrl.u32 %v277, 7
      %v279 = vsub.s32 0, %v278
      %v280 = vrot.slane %v275, %v279
      %v282 = vadd.f32 %v274, %v280
      %v283 = vmul.f32 %v282, %v282
      %v284 = vsel %vm269, %v283, 0.0
      %285 = vadd.xlane.f32.xlu0 %v284
      %v286 = vpop.xlane.xlu0 %285
      %v287 = vrsqrt.pop %v286
      %v288 = vmul.f32 %v286, %v287
      %vm289 = vcmp.eq.f32.partialorder %v286, inf
      %v290 = vsel %vm289, %v286, %v288
      %vm291 = vcmp.eq.f32.partialorder %v286, 0.0
      %v292 = vand.u32 %v286, 2147483648
      %v293 = vsel %vm291, %v292, %v290
      %s294 = sld [smem:[#allocation3]]
      %v295 = vmax.f32 %v293, 1e-12
      %v296 = vstv %s294
      %v297 = vrcp.pop %v295
      %v298 = vmul.f32 %v296, %v297
      %v299 = vmul.f32 %v282, %v298
      %v300 = vld [vmem:[%s4] sm:$0xff]
      %v301 = vld [vmem:[%s4 + $0x8] sm:$0xff]
      %v302 = vld [vmem:[%s4 + $0x10] sm:$0xff]
      %v303 = vld [vmem:[%s4 + $0x18] sm:$0xff]
      %v305 = vsel %vm195, %v299, 0
      %307 = vmatprep.subr.mxu0 0.0
      %308 = vmatpush1.msra.mxu0 0.0
      %309 = vmatprep.subr.mxu0 0.0
      %310 = vmatpush1.msra.mxu0 0.0
      %311 = vmatprep.subr.mxu0 0.0
      %312 = vmatpush1.msra.mxu0 0.0
      %313 = vmatprep.subr.mxu0 0.0
      %314 = vmatpush1.msra.mxu0 0.0
      %315 = vmatprep.subr.mxu0 0.0
      %316 = vmatpush1.msra.mxu0 0.0
      %317 = vmatprep.subr.mxu0 0.0
      %318 = vmatpush1.msra.mxu0 0.0
      %319 = vmatprep.subr.mxu0 0.0
      %320 = vmatpush1.msra.mxu0 0.0
      %321 = vmatprep.subr.mxu0 0.0
      %322 = vmatpush1.msra.mxu0 0.0
      %323 = vmatprep.subr.mxu0 0.0
      %324 = vmatpush1.msra.mxu0 0.0
      %325 = vmatprep.subr.mxu0 0.0
      %326 = vmatpush1.msra.mxu0 0.0
      %327 = vmatprep.subr.mxu0 0.0
      %328 = vmatpush1.msra.mxu0 0.0
      %329 = vmatprep.subr.mxu0 0.0
      %330 = vmatpush1.msra.mxu0 0.0
      %331 = vmatprep.subr.mxu0 0.0
      %332 = vmatpush1.msra.mxu0 %v303
      %333 = vmatprep.subr.mxu0 0.0
      %334 = vmatpush1.msra.mxu0 %v302
      %335 = vmatprep.subr.mxu0 0.0
      %336 = vmatpush1.msra.mxu0 %v301
      %337 = vmatprep.subr.mxu0 0.0
      %338 = vmatpush1.msra.mxu0 %v300
      %339 = vmatprep.subr.mxu0 0.0
      %340 = vmatpush2.msra.mxu0 0.0
      %341 = vmatprep.subr.mxu0 0.0
      %342 = vmatpush2.msra.mxu0 0.0
      %343 = vmatprep.subr.mxu0 0.0
      %344 = vmatpush2.msra.mxu0 0.0
      %345 = vmatprep.subr.mxu0 0.0
      %346 = vmatpush2.msra.mxu0 0.0
      %347 = vmatprep.subr.mxu0 0.0
      %348 = vmatpush2.msra.mxu0 0.0
      %349 = vmatprep.subr.mxu0 0.0
      %350 = vmatpush2.msra.mxu0 0.0
      %351 = vmatprep.subr.mxu0 0.0
      %352 = vmatpush2.msra.mxu0 0.0
      %353 = vmatprep.subr.mxu0 0.0
      %354 = vmatpush2.msra.mxu0 0.0
      %355 = vmatprep.subr.mxu0 0.0
      %356 = vmatpush2.msra.mxu0 0.0
      %357 = vmatprep.subr.mxu0 0.0
      %358 = vmatpush2.msra.mxu0 0.0
      %359 = vmatprep.subr.mxu0 0.0
      %360 = vmatpush2.msra.mxu0 0.0
      %361 = vmatprep.subr.mxu0 0.0
      %362 = vmatpush2.msra.mxu0 0.0
      %363 = vmatprep.subr.mxu0 0.0
      %364 = vmatpush2.msra.mxu0 0.0
      %365 = vmatprep.subr.mxu0 0.0
      %366 = vmatpush2.msra.mxu0 0.0
      %367 = vmatprep.subr.mxu0 0.0
      %368 = vmatpush2.msra.mxu0 0.0
      %369 = vmatprep.subr.mxu0 0.0
      %370 = vmatpush2.msra.mxu0 0.0
      %371 = vmatprep.mubr.f32.mxu0 0.0
      %372 = vmatmul.mubr.f32.gmra.mxu0 %v305
      %v373 = vpop.f32.mrf.mxu0
      %v374 = vadd.f32 0.0, %v373
      %v375 = vpop.f32.mrf.mxu0
      %376 = vdwg.mxu0
      %377 = vst [vmem:[#allocation4] sm:$0x3] %v374
    $region29: #{tpu_custom_call.1} parent=1 // pred_fallthru
      _
    // Predicated region
    $region30: #{tpu_custom_call.1} parent=1 // pred_check
      _
    $region31: #{tpu_custom_call.1} parent=1 // pred_check_branch
      %379 = sbr.rel (0) target = $region33
    $region32: #{tpu_custom_call.1} parent=1 // pred_region
      %s381 = ssub.s32 32, 32
      %382 = vsyncadd [#allocation5], %s381
      %s384 = sshll.u32 [#allocation4], 4
      %s385 = int_to_ptr.vmem [resolvable:$true] %s384
      %387 = dma.vmem_to_hbm [thread:$0]  %s385, 32, %s5, [#allocation5]
    $region33: #{tpu_custom_call.1} parent=1 // pred_fallthru
      _
    // Predicated region
    $region34: #{tpu_custom_call.1} parent=1 // pred_check
      _
    $region35: #{tpu_custom_call.1} parent=1 // pred_check_branch
      %389 = sbr.rel (0) target = $region37
    $region36: #{tpu_custom_call.1} parent=1 // pred_region
      %390 = dma.done [#allocation5], 32
    $region37: #{tpu_custom_call.1} parent=1 // pred_fallthru
      _
    %391 = vsyncpa [#allocation5], 1

</llo_original>
